<compile_context>
chip_gen: v6e
topology: v6e:2x2x1
jax: 0.10.0
libtpu: 0.0.40
codegen_flags: <defaults>
</compile_context>

<pallas_src>
import functools

import jax
import jax.numpy as jnp
from jax import lax
from jax.experimental import pallas as pl
from jax.experimental.pallas import tpu as pltpu


def _round_up(x, m):
    return ((x + m - 1) // m) * m


def _choose_tile(n, tile_n):
    """Pick (tile, n_pad).

    - tile is a multiple of 16 (bf16 packs 16 sublanes per vreg).
    - once each TensorCore can get >= 128 rows, force >= 2 grid steps so
      v7x's two cores both get work (no effect on v5e/v6e).
    - multi-step tiles are multiples of 128 so the lane-dense (1, tile)
      output block stays a legal block shape.
    """
    n = max(n, 1)
    if n <= tile_n:
        tile = _round_up(n, 16)
        n_pad = tile
        if n >= 256:
            tile = _round_up(-(-n // 2), 128)   # ceil(n/2) rounded to 128
            n_pad = _round_up(n, tile)
    else:
        tile = _round_up(tile_n, 128)
        n_pad = _round_up(n, tile)
    return tile, n_pad


def critic_kernel(x_ref, wsa1_ref, bsa1_ref, ws2_ref, bs2_ref,
                  w2_ref, b2_ref, w3_ref, b3_ref, out_ref):
    # x: (tile, 128) bf16, zero padded.  Lanes [0:state_dim] hold state,
    # lanes [state_dim:state_dim+action_dim] hold action, the rest are zero.
    x = x_ref[...]

    # Fused first layer [fcs1 | fca1] via block-diagonal weight -> (tile, 384)
    h1 = jnp.dot(x, wsa1_ref[...], preferred_element_type=jnp.float32)
    h1 = jnp.maximum(h1 + bsa1_ref[...], 0.0)
    hs = h1[:, :256].astype(jnp.bfloat16)      # state branch (fcs1 out)
    ha = h1[:, 256:].astype(jnp.bfloat16)      # action branch (fca1 out)

    # fcs2 -> ReLU
    hs2 = jnp.dot(hs, ws2_ref[...], preferred_element_type=jnp.float32)
    hs2 = jnp.maximum(hs2 + bs2_ref[...], 0.0)                 # (tile, 128)

    # fc2 over concat([hs2, ha]) as ONE K=256 matmul -> ReLU
    # (kept K=256: fills the 256-deep MXU on v6e/v7x in a single push)
    hcat = jnp.concatenate([hs2.astype(jnp.bfloat16), ha], axis=-1)
    h = jnp.dot(hcat, w2_ref[...], preferred_element_type=jnp.float32)
    h = jnp.maximum(h + b2_ref[...], 0.0)                      # (tile, 128)

    # fc3 (128 -> 1), lane-dense: (1,128) . (tile,128)^T -> (1, tile) so the
    # output store is unmasked along lanes instead of (tile,1) masked stores.
    q_row = lax.dot_general(
        w3_ref[...], h.astype(jnp.bfloat16),
        dimension_numbers=(((1,), (1,)), ((), ())),
        preferred_element_type=jnp.float32)                    # (1, tile)
    out_ref[...] = q_row + b3_ref[...]


@functools.partial(jax.jit, static_argnames=("tile_n",))
def critic_forward(state, action, packed, *, tile_n=1024):
    n, state_dim = state.shape
    action_dim = action.shape[1]
    pack_width = packed["wsa1"].shape[0]

    tile, n_pad = _choose_tile(n, tile_n)
    grid = (n_pad // tile,)

    # Pack [state | action | 0-pad] directly in bf16 — no f32 round trip.
    # Under jit the cast + concat + pad fuse into a single pass over HBM.
    x = jnp.concatenate(
        [state.astype(jnp.bfloat16), action.astype(jnp.bfloat16)], axis=-1)
    x = jnp.pad(x, ((0, n_pad - n),
                    (0, pack_width - state_dim - action_dim)))

    args = (x, packed["wsa1"], packed["bsa1"], packed["ws2"], packed["bs2"],
            packed["w2"], packed["b2"], packed["w3"], packed["b3"])

    in_specs = [pl.BlockSpec((tile, pack_width), lambda i: (i, 0))]
    # Weights/biases: full block, same index every step -> resident in VMEM.
    in_specs += [pl.BlockSpec(a.shape, lambda i: (0, 0)) for a in args[1:]]

    flops = 2 * n_pad * (pack_width * 384 + 256 * 128 + 256 * 128 + 128)
    bytes_accessed = (int(x.size) * 2
                      + sum(int(v.size) * v.dtype.itemsize
                            for v in packed.values())
                      + n_pad * 4)

    out = pl.pallas_call(
        critic_kernel,
        out_shape=jax.ShapeDtypeStruct((1, n_pad), jnp.float32),
        grid=grid,
        in_specs=in_specs,
        out_specs=pl.BlockSpec((1, tile), lambda i: (0, i)),
        compiler_params=pltpu.CompilerParams(
            dimension_semantics=("parallel",)),
        cost_estimate=pl.CostEstimate(
            flops=flops, transcendentals=0, bytes_accessed=bytes_accessed),
    )(*args)
    return out[0, :n].reshape(n, 1)


def init_params(key, state_dim, action_dim):
    """Logical params mirroring the PyTorch module (weights pre-transposed)."""
    ks = jax.random.split(key, 10)

    def fanin_uniform(k, in_f, out_f, fanin):
        v = 1.0 / (fanin ** 0.5)
        return jax.random.uniform(k, (in_f, out_f), jnp.float32, -v, v)

    def bias_default(k, in_f, out_f):
        v = 1.0 / (in_f ** 0.5)
        return jax.random.uniform(k, (1, out_f), jnp.float32, -v, v)

    p = {}
    # fcs1: Linear(state_dim, 256); fanin_init uses size[0] == out_features
    # (reproduces the original DDPG code's size()[0] quirk on purpose).
    p["ws1"] = fanin_uniform(ks[0], state_dim, 256, 256)
    p["bs1"] = bias_default(ks[1], state_dim, 256)
    # fcs2: Linear(256, 128)
    p["ws2"] = fanin_uniform(ks[2], 256, 128, 128)
    p["bs2"] = bias_default(ks[3], 256, 128)
    # fca1: Linear(action_dim, 128)
    p["wa1"] = fanin_uniform(ks[4], action_dim, 128, 128)
    p["ba1"] = bias_default(ks[5], action_dim, 128)
    # fc2: Linear(256, 128)
    p["w2"] = fanin_uniform(ks[6], 256, 128, 128)
    p["b2"] = bias_default(ks[7], 256, 128)
    # fc3: Linear(128, 1): weight ~ U(-0.003, 0.003), default bias.
    p["w3"] = jax.random.uniform(ks[8], (128, 1), jnp.float32, -0.003, 0.003)
    p["b3"] = bias_default(ks[9], 128, 1)
    return p


def pack_params(p, state_dim, action_dim):
    """Kernel-side params: fused block-diag first layer, bf16 matmul weights."""
    pack_width = max(128, _round_up(state_dim + action_dim, 128))
    wsa1 = jnp.zeros((pack_width, 384), jnp.float32)
    wsa1 = wsa1.at[:state_dim, :256].set(p["ws1"])
    wsa1 = wsa1.at[state_dim:state_dim + action_dim, 256:].set(p["wa1"])
    return {
        "wsa1": wsa1.astype(jnp.bfloat16),                        # (128, 384)
        "bsa1": jnp.concatenate([p["bs1"], p["ba1"]], axis=-1),   # (1, 384) f32
        "ws2": p["ws2"].astype(jnp.bfloat16),                     # (256, 128)
        "bs2": p["bs2"],                                          # (1, 128) f32
        "w2": p["w2"].astype(jnp.bfloat16),                       # (256, 128)
        "b2": p["b2"],                                            # (1, 128) f32
        "w3": p["w3"].reshape(1, 128).astype(jnp.bfloat16),       # (1, 128)
        "b3": p["b3"],                                            # (1, 1) f32
    }


def critic_ref(state, action, p):
    """Pure-JAX f32 reference of the same forward pass."""
    hs = jax.nn.relu(state @ p["ws1"] + p["bs1"])
    hs = jax.nn.relu(hs @ p["ws2"] + p["bs2"])
    ha = jax.nn.relu(action @ p["wa1"] + p["ba1"])
    x = jnp.concatenate([hs, ha], axis=-1)
    h = jax.nn.relu(x @ p["w2"] + p["b2"])
    return h @ p["w3"] + p["b3"]


if __name__ == "__main__":
    batch, state_dim, action_dim = 2, 16, 4

    key = jax.random.PRNGKey(0)
    k_state, k_action, k_params = jax.random.split(key, 3)
    state = jax.random.normal(k_state, (batch, state_dim), jnp.float32)
    action = jax.random.normal(k_action, (batch, action_dim), jnp.float32)

    params = init_params(k_params, state_dim, action_dim)
    packed = pack_params(params, state_dim, action_dim)

    q = critic_forward(state, action, packed)
    q = jax.block_until_ready(q)

    q_ref = critic_ref(state, action, params)
    assert q.shape == (batch, 1)
    # bf16 matmul operands with f32 accumulation -> small tolerance vs f32 ref
    # (intentional precision tradeoff for MXU throughput).
    assert jnp.allclose(q, q_ref, atol=1e-2, rtol=1e-2), (q, q_ref)

    print("KERNEL_OK")
</pallas_src>

<mosaic_0001>
module attributes {stable_mosaic.version = 11 : i64} {
  func.func @critic_kernel(%arg0: i32, %arg1: memref<16x128xbf16, #tpu.memory_space<vmem>>, %arg2: memref<128x384xbf16, #tpu.memory_space<vmem>>, %arg3: memref<1x384xf32, #tpu.memory_space<vmem>>, %arg4: memref<256x128xbf16, #tpu.memory_space<vmem>>, %arg5: memref<1x128xf32, #tpu.memory_space<vmem>>, %arg6: memref<256x128xbf16, #tpu.memory_space<vmem>>, %arg7: memref<1x128xf32, #tpu.memory_space<vmem>>, %arg8: memref<1x128xbf16, #tpu.memory_space<vmem>>, %arg9: memref<1x1xf32, #tpu.memory_space<vmem>>, %arg10: memref<1x16xf32, #tpu.memory_space<vmem>>) attributes {dimension_semantics = [#tpu.dimension_semantics<parallel>], iteration_bounds = array<i64: 1>, scalar_prefetch = 0 : i64, scratch_operands = 0 : i64, tpu.core_type = #tpu.core_type<tc>, window_params = [{transform_indices = @transform_0, window_bounds = array<i64: 16, 128>}, {pipeline_mode = #tpu.pipeline_mode<synchronous>, transform_indices = @transform_1, window_bounds = array<i64: 128, 384>}, {pipeline_mode = #tpu.pipeline_mode<synchronous>, transform_indices = @transform_2, window_bounds = array<i64: 1, 384>}, {pipeline_mode = #tpu.pipeline_mode<synchronous>, transform_indices = @transform_3, window_bounds = array<i64: 256, 128>}, {pipeline_mode = #tpu.pipeline_mode<synchronous>, transform_indices = @transform_4, window_bounds = array<i64: 1, 128>}, {pipeline_mode = #tpu.pipeline_mode<synchronous>, transform_indices = @transform_5, window_bounds = array<i64: 256, 128>}, {pipeline_mode = #tpu.pipeline_mode<synchronous>, transform_indices = @transform_6, window_bounds = array<i64: 1, 128>}, {pipeline_mode = #tpu.pipeline_mode<synchronous>, transform_indices = @transform_7, window_bounds = array<i64: 1, 128>}, {pipeline_mode = #tpu.pipeline_mode<synchronous>, transform_indices = @transform_8, window_bounds = array<i64: 1, 1>}, {transform_indices = @transform_9, window_bounds = array<i64: 1, 16>}]} {
    %c0 = arith.constant 0 : index
    %c0_0 = arith.constant 0 : index
    %0 = vector.load %arg1[%c0, %c0_0] : memref<16x128xbf16, #tpu.memory_space<vmem>>, vector<16x128xbf16>
    %c0_1 = arith.constant 0 : index
    %c0_2 = arith.constant 0 : index
    %1 = vector.load %arg2[%c0_1, %c0_2] : memref<128x384xbf16, #tpu.memory_space<vmem>>, vector<128x384xbf16>
    %cst = arith.constant dense<0.000000e+00> : vector<16x384xf32>
    %2 = tpu.matmul %0, %1, %cst {dimension_numbers = #tpu.dot_dimension_numbers<[1], [0], [0], [1], [0, 0, 1, 1], [], []>} : vector<16x128xbf16>, vector<128x384xbf16>, vector<16x384xf32> -> vector<16x384xf32>
    %c0_3 = arith.constant 0 : index
    %c0_4 = arith.constant 0 : index
    %3 = vector.load %arg3[%c0_3, %c0_4] : memref<1x384xf32, #tpu.memory_space<vmem>>, vector<1x384xf32>
    %4 = vector.broadcast %3 : vector<1x384xf32> to vector<16x384xf32>
    %5 = arith.addf %2, %4 : vector<16x384xf32>
    %cst_5 = arith.constant 0.000000e+00 : f32
    %6 = vector.broadcast %cst_5 : f32 to vector<16x384xf32>
    %7 = arith.maximumf %5, %6 : vector<16x384xf32>
    %8 = vector.extract_strided_slice %7 {offsets = [0, 0], sizes = [16, 256], strides = [1, 1]} : vector<16x384xf32> to vector<16x256xf32>
    %9 = arith.truncf %8 : vector<16x256xf32> to vector<16x256xbf16>
    %10 = vector.extract_strided_slice %7 {offsets = [0, 256], sizes = [16, 128], strides = [1, 1]} : vector<16x384xf32> to vector<16x128xf32>
    %11 = arith.truncf %10 : vector<16x128xf32> to vector<16x128xbf16>
    %c0_6 = arith.constant 0 : index
    %c0_7 = arith.constant 0 : index
    %12 = vector.load %arg4[%c0_6, %c0_7] : memref<256x128xbf16, #tpu.memory_space<vmem>>, vector<256x128xbf16>
    %cst_8 = arith.constant dense<0.000000e+00> : vector<16x128xf32>
    %13 = tpu.matmul %9, %12, %cst_8 {dimension_numbers = #tpu.dot_dimension_numbers<[1], [0], [0], [1], [0, 0, 1, 1], [], []>} : vector<16x256xbf16>, vector<256x128xbf16>, vector<16x128xf32> -> vector<16x128xf32>
    %c0_9 = arith.constant 0 : index
    %c0_10 = arith.constant 0 : index
    %14 = vector.load %arg5[%c0_9, %c0_10] : memref<1x128xf32, #tpu.memory_space<vmem>>, vector<1x128xf32>
    %15 = vector.broadcast %14 : vector<1x128xf32> to vector<16x128xf32>
    %16 = arith.addf %13, %15 : vector<16x128xf32>
    %cst_11 = arith.constant 0.000000e+00 : f32
    %17 = vector.broadcast %cst_11 : f32 to vector<16x128xf32>
    %18 = arith.maximumf %16, %17 : vector<16x128xf32>
    %19 = arith.truncf %18 : vector<16x128xf32> to vector<16x128xbf16>
    %20 = tpu.concatenate %19, %11 in 1 : vector<16x128xbf16>, vector<16x128xbf16> -> vector<16x256xbf16>
    %c0_12 = arith.constant 0 : index
    %c0_13 = arith.constant 0 : index
    %21 = vector.load %arg6[%c0_12, %c0_13] : memref<256x128xbf16, #tpu.memory_space<vmem>>, vector<256x128xbf16>
    %cst_14 = arith.constant dense<0.000000e+00> : vector<16x128xf32>
    %22 = tpu.matmul %20, %21, %cst_14 {dimension_numbers = #tpu.dot_dimension_numbers<[1], [0], [0], [1], [0, 0, 1, 1], [], []>} : vector<16x256xbf16>, vector<256x128xbf16>, vector<16x128xf32> -> vector<16x128xf32>
    %c0_15 = arith.constant 0 : index
    %c0_16 = arith.constant 0 : index
    %23 = vector.load %arg7[%c0_15, %c0_16] : memref<1x128xf32, #tpu.memory_space<vmem>>, vector<1x128xf32>
    %24 = vector.broadcast %23 : vector<1x128xf32> to vector<16x128xf32>
    %25 = arith.addf %22, %24 : vector<16x128xf32>
    %cst_17 = arith.constant 0.000000e+00 : f32
    %26 = vector.broadcast %cst_17 : f32 to vector<16x128xf32>
    %27 = arith.maximumf %25, %26 : vector<16x128xf32>
    %c0_18 = arith.constant 0 : index
    %c0_19 = arith.constant 0 : index
    %28 = vector.load %arg8[%c0_18, %c0_19] : memref<1x128xbf16, #tpu.memory_space<vmem>>, vector<1x128xbf16>
    %29 = arith.truncf %27 : vector<16x128xf32> to vector<16x128xbf16>
    %cst_20 = arith.constant dense<0.000000e+00> : vector<1x16xf32>
    %30 = tpu.matmul %28, %29, %cst_20 {dimension_numbers = #tpu.dot_dimension_numbers<[1], [1], [0], [0], [0, 0, 1, 0], [], []>} : vector<1x128xbf16>, vector<16x128xbf16>, vector<1x16xf32> -> vector<1x16xf32>
    %c0_21 = arith.constant 0 : index
    %c0_22 = arith.constant 0 : index
    %31 = vector.load %arg9[%c0_21, %c0_22] : memref<1x1xf32, #tpu.memory_space<vmem>>, vector<1x1xf32>
    %32 = vector.broadcast %31 : vector<1x1xf32> to vector<1x16xf32>
    %33 = arith.addf %30, %32 : vector<1x16xf32>
    %c0_23 = arith.constant 0 : index
    %c0_24 = arith.constant 0 : index
    %34 = vector.load %arg10[%c0_23, %c0_24] : memref<1x16xf32, #tpu.memory_space<vmem>>, vector<1x16xf32>
    tpu.vector_store %arg10[%c0_23, %c0_24], %33 {strides = array<i32>} : memref<1x16xf32, #tpu.memory_space<vmem>>, vector<1x16xf32>,
    return
  }
  func.func @transform_0(%arg0: i32) -> (i32, i32) {
    %c0_i32 = arith.constant 0 : i32
    %c0_i32_0 = arith.constant 0 : i32
    return %arg0, %c0_i32 : i32, i32
  }
  func.func @transform_1(%arg0: i32) -> (i32, i32) {
    %c0_i32 = arith.constant 0 : i32
    %c0_i32_0 = arith.constant 0 : i32
    %c0_i32_1 = arith.constant 0 : i32
    return %c0_i32, %c0_i32_0 : i32, i32
  }
  func.func @transform_2(%arg0: i32) -> (i32, i32) {
    %c0_i32 = arith.constant 0 : i32
    %c0_i32_0 = arith.constant 0 : i32
    %c0_i32_1 = arith.constant 0 : i32
    return %c0_i32, %c0_i32_0 : i32, i32
  }
  func.func @transform_3(%arg0: i32) -> (i32, i32) {
    %c0_i32 = arith.constant 0 : i32
    %c0_i32_0 = arith.constant 0 : i32
    %c0_i32_1 = arith.constant 0 : i32
    return %c0_i32, %c0_i32_0 : i32, i32
  }
  func.func @transform_4(%arg0: i32) -> (i32, i32) {
    %c0_i32 = arith.constant 0 : i32
    %c0_i32_0 = arith.constant 0 : i32
    %c0_i32_1 = arith.constant 0 : i32
    return %c0_i32, %c0_i32_0 : i32, i32
  }
  func.func @transform_5(%arg0: i32) -> (i32, i32) {
    %c0_i32 = arith.constant 0 : i32
    %c0_i32_0 = arith.constant 0 : i32
    %c0_i32_1 = arith.constant 0 : i32
    return %c0_i32, %c0_i32_0 : i32, i32
  }
  func.func @transform_6(%arg0: i32) -> (i32, i32) {
    %c0_i32 = arith.constant 0 : i32
    %c0_i32_0 = arith.constant 0 : i32
    %c0_i32_1 = arith.constant 0 : i32
    return %c0_i32, %c0_i32_0 : i32, i32
  }
  func.func @transform_7(%arg0: i32) -> (i32, i32) {
    %c0_i32 = arith.constant 0 : i32
    %c0_i32_0 = arith.constant 0 : i32
    %c0_i32_1 = arith.constant 0 : i32
    return %c0_i32, %c0_i32_0 : i32, i32
  }
  func.func @transform_8(%arg0: i32) -> (i32, i32) {
    %c0_i32 = arith.constant 0 : i32
    %c0_i32_0 = arith.constant 0 : i32
    %c0_i32_1 = arith.constant 0 : i32
    return %c0_i32, %c0_i32_0 : i32, i32
  }
  func.func @transform_9(%arg0: i32) -> (i32, i32) {
    %c0_i32 = arith.constant 0 : i32
    %c0_i32_0 = arith.constant 0 : i32
    return %c0_i32, %arg0 : i32, i32
  }
}

</mosaic_0001>

<llo_original>
// kernel: critic_forward.1
$region0: #{critic_forward.1}
  #allocation0 [shape = 'u32[]', space=smem, size = 0x4, offset = 0x4, fixed_abs, tag = 'smem constant byte address 0x4 - core index']
  #allocation1 [shape = 'u32[144,128]{1,0:T(1,128)}', space=vmem, size = 0x12000, scoped, tag = 'internal scratch']
  #allocation2 [shape = 'f32[1,1]{1,0:T(1,128)S(1)}', space=vmem, size = 0x200, scoped, tag = 'scoped memory for critic_forward.1']
  %s0 = inlined_call_operand.vmem [shape: bf16[16,128], index: 0, kind: input, shape index: {}]
  %s1 = inlined_call_operand.hbm [shape: bf16[128,384], index: 1, kind: input, shape index: {}]
  %s2 = inlined_call_operand.vmem [shape: f32[1,384], index: 2, kind: input, shape index: {}]
  %s3 = inlined_call_operand.hbm [shape: bf16[256,128], index: 3, kind: input, shape index: {}]
  %s4 = inlined_call_operand.vmem [shape: f32[1,128], index: 4, kind: input, shape index: {}]
  %s5 = inlined_call_operand.hbm [shape: bf16[256,128], index: 5, kind: input, shape index: {}]
  %s6 = inlined_call_operand.vmem [shape: f32[1,128], index: 6, kind: input, shape index: {}]
  %s7 = inlined_call_operand.vmem [shape: bf16[1,128], index: 7, kind: input, shape index: {}]
  %s8 = inlined_call_operand.<no memory space> [shape: f32[1,1], index: 8, kind: input, shape index: {}]
  %s9 = inlined_call_operand.vmem [shape: f32[1,16], index: 9, kind: output, shape index: {}]
  %s10 = sld [smem:[#allocation0]]
  $region58: #{critic_forward.1} parent=0
    _
  %s12 = ssub.s32 1, %s10
  %s13 = scalar_select 0, %s12, %s10
  %v14 = vstv %s8
  %15 = vst [vmem:[#allocation2] sm:$0x1] %v14
  $region1: #{critic_forward.1} parent=0
    #allocation3 [shape = 'u8[98304]{0}', space=vmem, size = 0x18000, scoped, tag = 'input window, operand 1, single buffered']
    #allocation4 [shape = 's32[1]{0}', space=sflag, size = 0x4, scoped, tag = 'scoped memory for critic_forward.1']
    #allocation5 [shape = 'u8[65536]{0}', space=vmem, size = 0x10000, scoped, tag = 'input window, operand 3, single buffered']
    #allocation6 [shape = 's32[1]{0}', space=sflag, size = 0x4, scoped, tag = 'scoped memory for critic_forward.1']
    #allocation7 [shape = 'u8[65536]{0}', space=vmem, size = 0x10000, scoped, tag = 'input window, operand 5, single buffered']
    %16 = vsyncpa [#allocation4], 0
    %17 = vsyncpa [#allocation6], 0
    // Predicated region
    $region2: #{critic_forward.1} parent=1 // pred_check
      _
    $region3: #{critic_forward.1} parent=1 // pred_check_branch
      %19 = sbr.rel (0) target = $region5
    $region4: #{critic_forward.1} parent=1 // pred_region
      _
    $region5: #{critic_forward.1} parent=1 // pred_fallthru
      _
    // Predicated region
    $region6: #{critic_forward.1} parent=1 // pred_check
      _
    $region7: #{critic_forward.1} parent=1 // pred_check_branch
      %21 = sbr.rel (0) target = $region9
    $region8: #{critic_forward.1} parent=1 // pred_region
      %s23 = ssub.s32 3072, 3072
      %24 = vsyncadd [#allocation4], %s23
      %s25 = sshll.u32 [#allocation3], 4
      %s26 = int_to_ptr.vmem [resolvable:$true] %s25
      %31 = dma.hbm_to_vmem [thread:$0]  %s1, 3072, %s26, [#allocation4], 192, 192, 12
    $region9: #{critic_forward.1} parent=1 // pred_fallthru
      _
    // Predicated region
    $region10: #{critic_forward.1} parent=1 // pred_check
      _
    $region11: #{critic_forward.1} parent=1 // pred_check_branch
      %33 = sbr.rel (0) target = $region13
    $region12: #{critic_forward.1} parent=1 // pred_region
      _
    $region13: #{critic_forward.1} parent=1 // pred_fallthru
      _
    // Predicated region
    $region14: #{critic_forward.1} parent=1 // pred_check
      _
    $region15: #{critic_forward.1} parent=1 // pred_check_branch
      %35 = sbr.rel (0) target = $region17
    $region16: #{critic_forward.1} parent=1 // pred_region
      %s37 = ssub.s32 2048, 2048
      %38 = vsyncadd [#allocation6], %s37
      %s39 = sshll.u32 [#allocation5], 4
      %s40 = int_to_ptr.vmem [resolvable:$true] %s39
      %45 = dma.hbm_to_vmem [thread:$0]  %s3, 2048, %s40, [#allocation6], 64, 64, 4
    $region17: #{critic_forward.1} parent=1 // pred_fallthru
      _
    // Predicated region
    $region18: #{critic_forward.1} parent=1 // pred_check
      _
    $region19: #{critic_forward.1} parent=1 // pred_check_branch
      %47 = sbr.rel (0) target = $region21
    $region20: #{critic_forward.1} parent=1 // pred_region
      _
    $region21: #{critic_forward.1} parent=1 // pred_fallthru
      _
    // Predicated region
    $region22: #{critic_forward.1} parent=1 // pred_check
      _
    $region23: #{critic_forward.1} parent=1 // pred_check_branch
      %49 = sbr.rel (0) target = $region25
    $region24: #{critic_forward.1} parent=1 // pred_region
      %s51 = ssub.s32 2048, 2048
      %52 = vsyncadd [#allocation6], %s51
      %s53 = sshll.u32 [#allocation7], 4
      %s54 = int_to_ptr.vmem [resolvable:$true] %s53
      %59 = dma.hbm_to_vmem [thread:$0]  %s5, 2048, %s54, [#allocation6], 64, 64, 4
    $region25: #{critic_forward.1} parent=1 // pred_fallthru
      _
    // Predicated region
    $region26: #{critic_forward.1} parent=1 // pred_check
      _
    $region27: #{critic_forward.1} parent=1 // pred_check_branch
      %61 = sbr.rel (0) target = $region29
    $region28: #{critic_forward.1} parent=1 // pred_region
      _
    $region29: #{critic_forward.1} parent=1 // pred_fallthru
      _
    // Predicated region
    $region30: #{critic_forward.1} parent=1 // pred_check
      _
    $region31: #{critic_forward.1} parent=1 // pred_check_branch
      %63 = sbr.rel (0) target = $region33
    $region32: #{critic_forward.1} parent=1 // pred_region
      _
    $region33: #{critic_forward.1} parent=1 // pred_fallthru
      _
    // Predicated region
    $region34: #{critic_forward.1} parent=1 // pred_check
      _
    $region35: #{critic_forward.1} parent=1 // pred_check_branch
      %65 = sbr.rel (0) target = $region37
    $region36: #{critic_forward.1} parent=1 // pred_region
      _
    $region37: #{critic_forward.1} parent=1 // pred_fallthru
      _
    // Predicated region
    $region38: #{critic_forward.1} parent=1 // pred_check
      _
    $region39: #{critic_forward.1} parent=1 // pred_check_branch
      %67 = sbr.rel (0) target = $region41
    $region40: #{critic_forward.1} parent=1 // pred_region
      %68 = dma.done [#allocation4], 3072
    $region41: #{critic_forward.1} parent=1 // pred_fallthru
      _
    // Predicated region
    $region42: #{critic_forward.1} parent=1 // pred_check
      _
    $region43: #{critic_forward.1} parent=1 // pred_check_branch
      %70 = sbr.rel (0) target = $region45
    $region44: #{critic_forward.1} parent=1 // pred_region
      %71 = dma.done [#allocation6], 2048
    $region45: #{critic_forward.1} parent=1 // pred_fallthru
      _
    // Predicated region
    $region46: #{critic_forward.1} parent=1 // pred_check
      _
    $region47: #{critic_forward.1} parent=1 // pred_check_branch
      %73 = sbr.rel (0) target = $region49
    $region48: #{critic_forward.1} parent=1 // pred_region
      %74 = dma.done [#allocation6], 2048
    $region49: #{critic_forward.1} parent=1 // pred_fallthru
      _
    %v76 = vld [vmem:[%s0] sm:$0xf]
    %v77 = vld [vmem:[%s0 + $0x4] sm:$0xf]
    %v78 = vld [vmem:[#allocation3] sm:$0xff]
    %v79 = vld [vmem:[#allocation3 + $0x8] sm:$0xf]
    %v80 = vld [vmem:[#allocation3 + $0xc] sm:$0xff]
    %v81 = vld [vmem:[#allocation3 + $0x14] sm:$0xf]
    %v82 = vld [vmem:[#allocation3 + $0x18] sm:$0xff]
    %v83 = vld [vmem:[#allocation3 + $0x20] sm:$0xf]
    %v84 = vld [vmem:[#allocation3 + $0x24] sm:$0xff]
    %v85 = vld [vmem:[#allocation3 + $0x2c] sm:$0xf]
    %v86 = vld [vmem:[#allocation3 + $0x30] sm:$0xff]
    %v87 = vld [vmem:[#allocation3 + $0x38] sm:$0xf]
    %v88 = vld [vmem:[#allocation3 + $0x3c] sm:$0xff]
    %v89 = vld [vmem:[#allocation3 + $0x44] sm:$0xf]
    %v90 = vld [vmem:[#allocation3 + $0x48] sm:$0xff]
    %v91 = vld [vmem:[#allocation3 + $0x50] sm:$0xf]
    %v92 = vld [vmem:[#allocation3 + $0x54] sm:$0xff]
    %v93 = vld [vmem:[#allocation3 + $0x5c] sm:$0xf]
    %v94 = vld [vmem:[#allocation3 + $0x60] sm:$0xff]
    %v95 = vld [vmem:[#allocation3 + $0x68] sm:$0xf]
    %v96 = vld [vmem:[#allocation3 + $0x6c] sm:$0xff]
    %v97 = vld [vmem:[#allocation3 + $0x74] sm:$0xf]
    %v98 = vld [vmem:[#allocation3 + $0x78] sm:$0xff]
    %v99 = vld [vmem:[#allocation3 + $0x80] sm:$0xf]
    %v100 = vld [vmem:[#allocation3 + $0x84] sm:$0xff]
    %v101 = vld [vmem:[#allocation3 + $0x8c] sm:$0xf]
    %v102 = vld [vmem:[#allocation3 + $0x90] sm:$0xff]
    %v103 = vld [vmem:[#allocation3 + $0x98] sm:$0xf]
    %v104 = vld [vmem:[#allocation3 + $0x9c] sm:$0xff]
    %v105 = vld [vmem:[#allocation3 + $0xa4] sm:$0xf]
    %v106 = vld [vmem:[#allocation3 + $0xa8] sm:$0xff]
    %v107 = vld [vmem:[#allocation3 + $0xb0] sm:$0xf]
    %v108 = vld [vmem:[#allocation3 + $0xb4] sm:$0xff]
    %v109 = vld [vmem:[#allocation3 + $0xbc] sm:$0xf]
    %v110 = vld [vmem:[%s2] sm:$0x7]
    %v112 = vlaneseq
    %v113 = vshrl.u32 %v112, 7
    %v114 = vsub.s32 0, %v113
    %v115 = vrot.slane %v110, %v114
    %v116 = vlaneseq
    %v117 = vshrl.u32 %v116, 7
    %v118 = vsub.s32 1, %v117
    %v119 = vrot.slane %v110, %v118
    %v120 = vlaneseq
    %v121 = vshrl.u32 %v120, 7
    %v122 = vsub.s32 2, %v121
    %v123 = vrot.slane %v110, %v122
    %v129 = vunpack.c.l.b16 %v76
    %v130 = vunpack.c.l.b16 %v77
    %v131 = vpack.c.b16 %v130, %v129
    %v165 = vunpack.c.l.b16 %v78
    %v166 = vunpack.c.h.b16 %v78
    %v167 = vunpack.c.l.b16 %v79
    %v168 = vunpack.c.l.b16 %v80
    %v169 = vunpack.c.h.b16 %v80
    %v170 = vunpack.c.l.b16 %v81
    %v171 = vunpack.c.l.b16 %v82
    %v172 = vunpack.c.h.b16 %v82
    %v173 = vunpack.c.l.b16 %v83
    %v174 = vunpack.c.l.b16 %v84
    %v175 = vunpack.c.h.b16 %v84
    %v176 = vunpack.c.l.b16 %v85
    %v177 = vunpack.c.l.b16 %v86
    %v178 = vunpack.c.h.b16 %v86
    %v179 = vunpack.c.l.b16 %v87
    %v180 = vunpack.c.l.b16 %v88
    %v181 = vunpack.c.h.b16 %v88
    %v182 = vunpack.c.l.b16 %v89
    %v183 = vunpack.c.l.b16 %v90
    %v184 = vunpack.c.h.b16 %v90
    %v185 = vunpack.c.l.b16 %v91
    %v186 = vunpack.c.l.b16 %v92
    %v187 = vunpack.c.h.b16 %v92
    %v188 = vunpack.c.l.b16 %v93
    %v189 = vunpack.c.l.b16 %v94
    %v190 = vunpack.c.h.b16 %v94
    %v191 = vunpack.c.l.b16 %v95
    %v192 = vunpack.c.l.b16 %v96
    %v193 = vunpack.c.h.b16 %v96
    %v194 = vunpack.c.l.b16 %v97
    %v195 = vunpack.c.l.b16 %v98
    %v196 = vunpack.c.h.b16 %v98
    %v197 = vunpack.c.l.b16 %v99
    %v198 = vunpack.c.l.b16 %v100
    %v199 = vunpack.c.h.b16 %v100
    %v200 = vunpack.c.l.b16 %v101
    %v201 = vunpack.c.l.b16 %v102
    %v202 = vunpack.c.h.b16 %v102
    %v203 = vunpack.c.l.b16 %v103
    %v204 = vunpack.c.l.b16 %v104
    %v205 = vunpack.c.h.b16 %v104
    %v206 = vunpack.c.l.b16 %v105
    %v207 = vunpack.c.l.b16 %v106
    %v208 = vunpack.c.h.b16 %v106
    %v209 = vunpack.c.l.b16 %v107
    %v210 = vunpack.c.l.b16 %v108
    %v211 = vunpack.c.h.b16 %v108
    %v212 = vunpack.c.l.b16 %v109
    %v213 = vpack.c.b16 %v168, %v165
    %v214 = vpack.c.b16 %v169, %v166
    %v215 = vpack.c.b16 %v170, %v167
    %v216 = vpack.c.b16 %v174, %v171
    %v217 = vpack.c.b16 %v175, %v172
    %v218 = vpack.c.b16 %v176, %v173
    %v219 = vpack.c.b16 %v180, %v177
    %v220 = vpack.c.b16 %v181, %v178
    %v221 = vpack.c.b16 %v182, %v179
    %v222 = vpack.c.b16 %v186, %v183
    %v223 = vpack.c.b16 %v187, %v184
    %v224 = vpack.c.b16 %v188, %v185
    %v225 = vpack.c.b16 %v192, %v189
    %v226 = vpack.c.b16 %v193, %v190
    %v227 = vpack.c.b16 %v194, %v191
    %v228 = vpack.c.b16 %v198, %v195
    %v229 = vpack.c.b16 %v199, %v196
    %v230 = vpack.c.b16 %v200, %v197
    %v231 = vpack.c.b16 %v204, %v201
    %v232 = vpack.c.b16 %v205, %v202
    %v233 = vpack.c.b16 %v206, %v203
    %v234 = vpack.c.b16 %v210, %v207
    %v235 = vpack.c.b16 %v211, %v208
    %v236 = vpack.c.b16 %v212, %v209
    %261 = vmatprep.subr.bf16.mxu0 %v235
    %262 = vmatpush1.bf16.msra.mxu0 %v234
    %263 = vmatprep.subr.bf16.mxu0 %v232
    %264 = vmatpush1.bf16.msra.mxu0 %v231
    %265 = vmatprep.subr.bf16.mxu0 %v229
    %266 = vmatpush1.bf16.msra.mxu0 %v228
    %267 = vmatprep.subr.bf16.mxu0 %v226
    %268 = vmatpush1.bf16.msra.mxu0 %v225
    %269 = vmatprep.subr.bf16.mxu0 %v223
    %270 = vmatpush1.bf16.msra.mxu0 %v222
    %271 = vmatprep.subr.bf16.mxu0 %v220
    %272 = vmatpush1.bf16.msra.mxu0 %v219
    %273 = vmatprep.subr.bf16.mxu0 %v217
    %274 = vmatpush1.bf16.msra.mxu0 %v216
    %275 = vmatprep.subr.bf16.mxu0 %v214
    %276 = vmatpush1.bf16.msra.mxu0 %v213
    %277 = vmatprep.subr.bf16.mxu0 0
    %278 = vmatpush2.bf16.msra.mxu0 0
    %279 = vmatprep.subr.bf16.mxu0 0
    %280 = vmatpush2.bf16.msra.mxu0 0
    %281 = vmatprep.subr.bf16.mxu0 0
    %282 = vmatpush2.bf16.msra.mxu0 0
    %283 = vmatprep.subr.bf16.mxu0 0
    %284 = vmatpush2.bf16.msra.mxu0 0
    %285 = vmatprep.subr.bf16.mxu0 0
    %286 = vmatpush2.bf16.msra.mxu0 0
    %287 = vmatprep.subr.bf16.mxu0 0
    %288 = vmatpush2.bf16.msra.mxu0 0
    %289 = vmatprep.subr.bf16.mxu0 0
    %290 = vmatpush2.bf16.msra.mxu0 0
    %291 = vmatprep.subr.bf16.mxu0 0
    %292 = vmatpush2.bf16.msra.mxu0 0
    %293 = vmatprep.mubr.bf16.mxu0 0
    %294 = vmatmul.mubr.bf16.gmra.mxu0 %v131
    %v295 = vpop.f32.mrf.mxu0
    %v296 = vadd.f32 %v115, %v295
    %v297 = vpop.f32.mrf.mxu0
    %v298 = vadd.f32 %v119, %v297
    %v299 = vpop.f32.mrf.mxu0
    %v300 = vadd.f32 %v115, %v299
    %v301 = vpop.f32.mrf.mxu0
    %v302 = vadd.f32 %v119, %v301
    %303 = vdwg.mxu0
    %304 = vmatprep.subr.bf16.mxu0 0
    %305 = vmatpush1.bf16.msra.mxu0 %v236
    %306 = vmatprep.subr.bf16.mxu0 0
    %307 = vmatpush1.bf16.msra.mxu0 %v233
    %308 = vmatprep.subr.bf16.mxu0 0
    %309 = vmatpush1.bf16.msra.mxu0 %v230
    %310 = vmatprep.subr.bf16.mxu0 0
    %311 = vmatpush1.bf16.msra.mxu0 %v227
    %312 = vmatprep.subr.bf16.mxu0 0
    %313 = vmatpush1.bf16.msra.mxu0 %v224
    %314 = vmatprep.subr.bf16.mxu0 0
    %315 = vmatpush1.bf16.msra.mxu0 %v221
    %316 = vmatprep.subr.bf16.mxu0 0
    %317 = vmatpush1.bf16.msra.mxu0 %v218
    %318 = vmatprep.subr.bf16.mxu0 0
    %319 = vmatpush1.bf16.msra.mxu0 %v215
    %320 = vmatprep.subr.bf16.mxu0 0
    %321 = vmatpush2.bf16.msra.mxu0 0
    %322 = vmatprep.subr.bf16.mxu0 0
    %323 = vmatpush2.bf16.msra.mxu0 0
    %324 = vmatprep.subr.bf16.mxu0 0
    %325 = vmatpush2.bf16.msra.mxu0 0
    %326 = vmatprep.subr.bf16.mxu0 0
    %327 = vmatpush2.bf16.msra.mxu0 0
    %328 = vmatprep.subr.bf16.mxu0 0
    %329 = vmatpush2.bf16.msra.mxu0 0
    %330 = vmatprep.subr.bf16.mxu0 0
    %331 = vmatpush2.bf16.msra.mxu0 0
    %332 = vmatprep.subr.bf16.mxu0 0
    %333 = vmatpush2.bf16.msra.mxu0 0
    %334 = vmatprep.subr.bf16.mxu0 0
    %335 = vmatpush2.bf16.msra.mxu0 0
    %336 = vmatprep.mubr.bf16.mxu0 0
    %337 = vmatmul.mubr.bf16.gmra.mxu0 %v131
    %v338 = vpop.f32.mrf.mxu0
    %v339 = vadd.f32 %v123, %v338
    %v340 = vpop.f32.mrf.mxu0
    %v341 = vpop.f32.mrf.mxu0
    %v342 = vadd.f32 %v123, %v341
    %v343 = vpop.f32.mrf.mxu0
    %344 = vdwg.mxu0
    %v345 = vmax.f32 %v296, 0.0
    %v346 = vmax.f32 %v298, 0.0
    %v347 = vmax.f32 %v339, 0.0
    %v348 = vmax.f32 %v300, 0.0
    %v349 = vmax.f32 %v302, 0.0
    %v350 = vmax.f32 %v342, 0.0
    %v351 = vpack.c.bf16 %v348, %v345
    %v352 = vpack.c.bf16 %v349, %v346
    %v353 = vpack.c.bf16 %v350, %v347
    %v354 = vld [vmem:[#allocation5] sm:$0xf]
    %v355 = vld [vmem:[#allocation5 + $0x4] sm:$0xf]
    %v356 = vld [vmem:[#allocation5 + $0x8] sm:$0xf]
    %v357 = vld [vmem:[#allocation5 + $0xc] sm:$0xf]
    %v358 = vld [vmem:[#allocation5 + $0x10] sm:$0xf]
    %v359 = vld [vmem:[#allocation5 + $0x14] sm:$0xf]
    %v360 = vld [vmem:[#allocation5 + $0x18] sm:$0xf]
    %v361 = vld [vmem:[#allocation5 + $0x1c] sm:$0xf]
    %v362 = vld [vmem:[#allocation5 + $0x20] sm:$0xf]
    %v363 = vld [vmem:[#allocation5 + $0x24] sm:$0xf]
    %v364 = vld [vmem:[#allocation5 + $0x28] sm:$0xf]
    %v365 = vld [vmem:[#allocation5 + $0x2c] sm:$0xf]
    %v366 = vld [vmem:[#allocation5 + $0x30] sm:$0xf]
    %v367 = vld [vmem:[#allocation5 + $0x34] sm:$0xf]
    %v368 = vld [vmem:[#allocation5 + $0x38] sm:$0xf]
    %v369 = vld [vmem:[#allocation5 + $0x3c] sm:$0xf]
    %v370 = vld [vmem:[#allocation5 + $0x40] sm:$0xf]
    %v371 = vld [vmem:[#allocation5 + $0x44] sm:$0xf]
    %v372 = vld [vmem:[#allocation5 + $0x48] sm:$0xf]
    %v373 = vld [vmem:[#allocation5 + $0x4c] sm:$0xf]
    %v374 = vld [vmem:[#allocation5 + $0x50] sm:$0xf]
    %v375 = vld [vmem:[#allocation5 + $0x54] sm:$0xf]
    %v376 = vld [vmem:[#allocation5 + $0x58] sm:$0xf]
    %v377 = vld [vmem:[#allocation5 + $0x5c] sm:$0xf]
    %v378 = vld [vmem:[#allocation5 + $0x60] sm:$0xf]
    %v379 = vld [vmem:[#allocation5 + $0x64] sm:$0xf]
    %v380 = vld [vmem:[#allocation5 + $0x68] sm:$0xf]
    %v381 = vld [vmem:[#allocation5 + $0x6c] sm:$0xf]
    %v382 = vld [vmem:[#allocation5 + $0x70] sm:$0xf]
    %v383 = vld [vmem:[#allocation5 + $0x74] sm:$0xf]
    %v384 = vld [vmem:[#allocation5 + $0x78] sm:$0xf]
    %v385 = vld [vmem:[#allocation5 + $0x7c] sm:$0xf]
    %v386 = vld [vmem:[%s4] sm:$0x1]
    %v388 = vlaneseq
    %v389 = vshrl.u32 %v388, 7
    %v390 = vsub.s32 0, %v389
    %v391 = vrot.slane %v386, %v390
    %v425 = vunpack.c.l.b16 %v354
    %v426 = vunpack.c.l.b16 %v355
    %v427 = vunpack.c.l.b16 %v356
    %v428 = vunpack.c.l.b16 %v357
    %v429 = vunpack.c.l.b16 %v358
    %v430 = vunpack.c.l.b16 %v359
    %v431 = vunpack.c.l.b16 %v360
    %v432 = vunpack.c.l.b16 %v361
    %v433 = vunpack.c.l.b16 %v362
    %v434 = vunpack.c.l.b16 %v363
    %v435 = vunpack.c.l.b16 %v364
    %v436 = vunpack.c.l.b16 %v365
    %v437 = vunpack.c.l.b16 %v366
    %v438 = vunpack.c.l.b16 %v367
    %v439 = vunpack.c.l.b16 %v368
    %v440 = vunpack.c.l.b16 %v369
    %v441 = vunpack.c.l.b16 %v370
    %v442 = vunpack.c.l.b16 %v371
    %v443 = vunpack.c.l.b16 %v372
    %v444 = vunpack.c.l.b16 %v373
    %v445 = vunpack.c.l.b16 %v374
    %v446 = vunpack.c.l.b16 %v375
    %v447 = vunpack.c.l.b16 %v376
    %v448 = vunpack.c.l.b16 %v377
    %v449 = vunpack.c.l.b16 %v378
    %v450 = vunpack.c.l.b16 %v379
    %v451 = vunpack.c.l.b16 %v380
    %v452 = vunpack.c.l.b16 %v381
    %v453 = vunpack.c.l.b16 %v382
    %v454 = vunpack.c.l.b16 %v383
    %v455 = vunpack.c.l.b16 %v384
    %v456 = vunpack.c.l.b16 %v385
    %v457 = vpack.c.b16 %v426, %v425
    %v458 = vpack.c.b16 %v428, %v427
    %v459 = vpack.c.b16 %v430, %v429
    %v460 = vpack.c.b16 %v432, %v431
    %v461 = vpack.c.b16 %v434, %v433
    %v462 = vpack.c.b16 %v436, %v435
    %v463 = vpack.c.b16 %v438, %v437
    %v464 = vpack.c.b16 %v440, %v439
    %v465 = vpack.c.b16 %v442, %v441
    %v466 = vpack.c.b16 %v444, %v443
    %v467 = vpack.c.b16 %v446, %v445
    %v468 = vpack.c.b16 %v448, %v447
    %v469 = vpack.c.b16 %v450, %v449
    %v470 = vpack.c.b16 %v452, %v451
    %v471 = vpack.c.b16 %v454, %v453
    %v472 = vpack.c.b16 %v456, %v455
    %489 = vmatprep.subr.bf16.mxu0 0
    %490 = vmatpush1.bf16.msra.mxu0 %v464
    %491 = vmatprep.subr.bf16.mxu0 0
    %492 = vmatpush1.bf16.msra.mxu0 %v463
    %493 = vmatprep.subr.bf16.mxu0 0
    %494 = vmatpush1.bf16.msra.mxu0 %v462
    %495 = vmatprep.subr.bf16.mxu0 0
    %496 = vmatpush1.bf16.msra.mxu0 %v461
    %497 = vmatprep.subr.bf16.mxu0 0
    %498 = vmatpush1.bf16.msra.mxu0 %v460
    %499 = vmatprep.subr.bf16.mxu0 0
    %500 = vmatpush1.bf16.msra.mxu0 %v459
    %501 = vmatprep.subr.bf16.mxu0 0
    %502 = vmatpush1.bf16.msra.mxu0 %v458
    %503 = vmatprep.subr.bf16.mxu0 0
    %504 = vmatpush1.bf16.msra.mxu0 %v457
    %505 = vmatprep.subr.bf16.mxu0 0
    %506 = vmatpush2.bf16.msra.mxu0 %v472
    %507 = vmatprep.subr.bf16.mxu0 0
    %508 = vmatpush2.bf16.msra.mxu0 %v471
    %509 = vmatprep.subr.bf16.mxu0 0
    %510 = vmatpush2.bf16.msra.mxu0 %v470
    %511 = vmatprep.subr.bf16.mxu0 0
    %512 = vmatpush2.bf16.msra.mxu0 %v469
    %513 = vmatprep.subr.bf16.mxu0 0
    %514 = vmatpush2.bf16.msra.mxu0 %v468
    %515 = vmatprep.subr.bf16.mxu0 0
    %516 = vmatpush2.bf16.msra.mxu0 %v467
    %517 = vmatprep.subr.bf16.mxu0 0
    %518 = vmatpush2.bf16.msra.mxu0 %v466
    %519 = vmatprep.subr.bf16.mxu0 0
    %520 = vmatpush2.bf16.msra.mxu0 %v465
    %521 = vmatprep.mubr.bf16.mxu0 %v352
    %522 = vmatmul.mubr.bf16.gmra.mxu0 %v351
    %v523 = vpop.f32.mrf.mxu0
    %v524 = vadd.f32 %v391, %v523
    %v525 = vpop.f32.mrf.mxu0
    %v526 = vpop.f32.mrf.mxu0
    %v527 = vadd.f32 %v391, %v526
    %v528 = vpop.f32.mrf.mxu0
    %529 = vdwg.mxu0
    %v530 = vmax.f32 %v524, 0.0
    %v531 = vmax.f32 %v527, 0.0
    %v532 = vpack.c.bf16 %v531, %v530
    %v533 = vld [vmem:[#allocation7] sm:$0xf]
    %v534 = vld [vmem:[#allocation7 + $0x4] sm:$0xf]
    %v535 = vld [vmem:[#allocation7 + $0x8] sm:$0xf]
    %v536 = vld [vmem:[#allocation7 + $0xc] sm:$0xf]
    %v537 = vld [vmem:[#allocation7 + $0x10] sm:$0xf]
    %v538 = vld [vmem:[#allocation7 + $0x14] sm:$0xf]
    %v539 = vld [vmem:[#allocation7 + $0x18] sm:$0xf]
    %v540 = vld [vmem:[#allocation7 + $0x1c] sm:$0xf]
    %v541 = vld [vmem:[#allocation7 + $0x20] sm:$0xf]
    %v542 = vld [vmem:[#allocation7 + $0x24] sm:$0xf]
    %v543 = vld [vmem:[#allocation7 + $0x28] sm:$0xf]
    %v544 = vld [vmem:[#allocation7 + $0x2c] sm:$0xf]
    %v545 = vld [vmem:[#allocation7 + $0x30] sm:$0xf]
    %v546 = vld [vmem:[#allocation7 + $0x34] sm:$0xf]
    %v547 = vld [vmem:[#allocation7 + $0x38] sm:$0xf]
    %v548 = vld [vmem:[#allocation7 + $0x3c] sm:$0xf]
    %v549 = vld [vmem:[#allocation7 + $0x40] sm:$0xf]
    %v550 = vld [vmem:[#allocation7 + $0x44] sm:$0xf]
    %v551 = vld [vmem:[#allocation7 + $0x48] sm:$0xf]
    %v552 = vld [vmem:[#allocation7 + $0x4c] sm:$0xf]
    %v553 = vld [vmem:[#allocation7 + $0x50] sm:$0xf]
    %v554 = vld [vmem:[#allocation7 + $0x54] sm:$0xf]
    %v555 = vld [vmem:[#allocation7 + $0x58] sm:$0xf]
    %v556 = vld [vmem:[#allocation7 + $0x5c] sm:$0xf]
    %v557 = vld [vmem:[#allocation7 + $0x60] sm:$0xf]
    %v558 = vld [vmem:[#allocation7 + $0x64] sm:$0xf]
    %v559 = vld [vmem:[#allocation7 + $0x68] sm:$0xf]
    %v560 = vld [vmem:[#allocation7 + $0x6c] sm:$0xf]
    %v561 = vld [vmem:[#allocation7 + $0x70] sm:$0xf]
    %v562 = vld [vmem:[#allocation7 + $0x74] sm:$0xf]
    %v563 = vld [vmem:[#allocation7 + $0x78] sm:$0xf]
    %v564 = vld [vmem:[#allocation7 + $0x7c] sm:$0xf]
    %v565 = vld [vmem:[%s6] sm:$0x1]
    %v567 = vlaneseq
    %v568 = vshrl.u32 %v567, 7
    %v569 = vsub.s32 0, %v568
    %v570 = vrot.slane %v565, %v569
    %v604 = vunpack.c.l.b16 %v533
    %v605 = vunpack.c.l.b16 %v534
    %v606 = vunpack.c.l.b16 %v535
    %v607 = vunpack.c.l.b16 %v536
    %v608 = vunpack.c.l.b16 %v537
    %v609 = vunpack.c.l.b16 %v538
    %v610 = vunpack.c.l.b16 %v539
    %v611 = vunpack.c.l.b16 %v540
    %v612 = vunpack.c.l.b16 %v541
    %v613 = vunpack.c.l.b16 %v542
    %v614 = vunpack.c.l.b16 %v543
    %v615 = vunpack.c.l.b16 %v544
    %v616 = vunpack.c.l.b16 %v545
    %v617 = vunpack.c.l.b16 %v546
    %v618 = vunpack.c.l.b16 %v547
    %v619 = vunpack.c.l.b16 %v548
    %v620 = vunpack.c.l.b16 %v549
    %v621 = vunpack.c.l.b16 %v550
    %v622 = vunpack.c.l.b16 %v551
    %v623 = vunpack.c.l.b16 %v552
    %v624 = vunpack.c.l.b16 %v553
    %v625 = vunpack.c.l.b16 %v554
    %v626 = vunpack.c.l.b16 %v555
    %v627 = vunpack.c.l.b16 %v556
    %v628 = vunpack.c.l.b16 %v557
    %v629 = vunpack.c.l.b16 %v558
    %v630 = vunpack.c.l.b16 %v559
    %v631 = vunpack.c.l.b16 %v560
    %v632 = vunpack.c.l.b16 %v561
    %v633 = vunpack.c.l.b16 %v562
    %v634 = vunpack.c.l.b16 %v563
    %v635 = vunpack.c.l.b16 %v564
    %v636 = vpack.c.b16 %v605, %v604
    %v637 = vpack.c.b16 %v607, %v606
    %v638 = vpack.c.b16 %v609, %v608
    %v639 = vpack.c.b16 %v611, %v610
    %v640 = vpack.c.b16 %v613, %v612
    %v641 = vpack.c.b16 %v615, %v614
    %v642 = vpack.c.b16 %v617, %v616
    %v643 = vpack.c.b16 %v619, %v618
    %v644 = vpack.c.b16 %v621, %v620
    %v645 = vpack.c.b16 %v623, %v622
    %v646 = vpack.c.b16 %v625, %v624
    %v647 = vpack.c.b16 %v627, %v626
    %v648 = vpack.c.b16 %v629, %v628
    %v649 = vpack.c.b16 %v631, %v630
    %v650 = vpack.c.b16 %v633, %v632
    %v651 = vpack.c.b16 %v635, %v634
    %668 = vmatprep.subr.bf16.mxu0 0
    %669 = vmatpush1.bf16.msra.mxu0 %v643
    %670 = vmatprep.subr.bf16.mxu0 0
    %671 = vmatpush1.bf16.msra.mxu0 %v642
    %672 = vmatprep.subr.bf16.mxu0 0
    %673 = vmatpush1.bf16.msra.mxu0 %v641
    %674 = vmatprep.subr.bf16.mxu0 0
    %675 = vmatpush1.bf16.msra.mxu0 %v640
    %676 = vmatprep.subr.bf16.mxu0 0
    %677 = vmatpush1.bf16.msra.mxu0 %v639
    %678 = vmatprep.subr.bf16.mxu0 0
    %679 = vmatpush1.bf16.msra.mxu0 %v638
    %680 = vmatprep.subr.bf16.mxu0 0
    %681 = vmatpush1.bf16.msra.mxu0 %v637
    %682 = vmatprep.subr.bf16.mxu0 0
    %683 = vmatpush1.bf16.msra.mxu0 %v636
    %684 = vmatprep.subr.bf16.mxu0 0
    %685 = vmatpush2.bf16.msra.mxu0 %v651
    %686 = vmatprep.subr.bf16.mxu0 0
    %687 = vmatpush2.bf16.msra.mxu0 %v650
    %688 = vmatprep.subr.bf16.mxu0 0
    %689 = vmatpush2.bf16.msra.mxu0 %v649
    %690 = vmatprep.subr.bf16.mxu0 0
    %691 = vmatpush2.bf16.msra.mxu0 %v648
    %692 = vmatprep.subr.bf16.mxu0 0
    %693 = vmatpush2.bf16.msra.mxu0 %v647
    %694 = vmatprep.subr.bf16.mxu0 0
    %695 = vmatpush2.bf16.msra.mxu0 %v646
    %696 = vmatprep.subr.bf16.mxu0 0
    %697 = vmatpush2.bf16.msra.mxu0 %v645
    %698 = vmatprep.subr.bf16.mxu0 0
    %699 = vmatpush2.bf16.msra.mxu0 %v644
    %700 = vmatprep.mubr.bf16.mxu0 %v353
    %701 = vmatmul.mubr.bf16.gmra.mxu0 %v532
    %v702 = vpop.f32.mrf.mxu0
    %v703 = vadd.f32 %v570, %v702
    %v704 = vpop.f32.mrf.mxu0
    %v705 = vpop.f32.mrf.mxu0
    %v706 = vadd.f32 %v570, %v705
    %v707 = vpop.f32.mrf.mxu0
    %708 = vdwg.mxu0
    %v709 = vmax.f32 %v703, 0.0
    %v710 = vmax.f32 %v706, 0.0
    %v711 = vld [vmem:[%s7] sm:$0x1]
    %v712 = vpack.c.bf16 %v710, %v709
    %v713 = vld [vmem:[#allocation2] sm:$0x1]
    %715 = vset.pattern.permute.xlu0 0
    %716 = vperm.xlu0 %715, %v713
    %v717 = vpop.permute.xlu0 %716
    %v719 = vlaneseq
    %v720 = vshrl.u32 %v719, 7
    %v721 = vsub.s32 0, %v720
    %v722 = vrot.slane %v717, %v721
    %723 = vmatprep.subr.bf16.mxu0 0
    %724 = vmatpush1.bf16.xpose.msra.mxu0 0
    %725 = vmatprep.subr.bf16.mxu0 0
    %726 = vmatpush1.bf16.xpose.msra.mxu0 0
    %727 = vmatprep.subr.bf16.mxu0 0
    %728 = vmatpush1.bf16.xpose.msra.mxu0 0
    %729 = vmatprep.subr.bf16.mxu0 0
    %730 = vmatpush1.bf16.xpose.msra.mxu0 0
    %731 = vmatprep.subr.bf16.mxu0 0
    %732 = vmatpush1.bf16.xpose.msra.mxu0 0
    %733 = vmatprep.subr.bf16.mxu0 0
    %734 = vmatpush1.bf16.xpose.msra.mxu0 0
    %735 = vmatprep.subr.bf16.mxu0 0
    %736 = vmatpush1.bf16.xpose.msra.mxu0 0
    %737 = vmatprep.subr.bf16.mxu0 0
    %738 = vmatpush1.bf16.xpose.msra.mxu0 %v712
    %739 = vmatprep.subr.bf16.mxu0 0
    %740 = vmatpush2.bf16.xpose.msra.mxu0 0
    %741 = vmatprep.subr.bf16.mxu0 0
    %742 = vmatpush2.bf16.xpose.msra.mxu0 0
    %743 = vmatprep.subr.bf16.mxu0 0
    %744 = vmatpush2.bf16.xpose.msra.mxu0 0
    %745 = vmatprep.subr.bf16.mxu0 0
    %746 = vmatpush2.bf16.xpose.msra.mxu0 0
    %747 = vmatprep.subr.bf16.mxu0 0
    %748 = vmatpush2.bf16.xpose.msra.mxu0 0
    %749 = vmatprep.subr.bf16.mxu0 0
    %750 = vmatpush2.bf16.xpose.msra.mxu0 0
    %751 = vmatprep.subr.bf16.mxu0 0
    %752 = vmatpush2.bf16.xpose.msra.mxu0 0
    %753 = vmatprep.subr.bf16.mxu0 0
    %754 = vmatpush2.bf16.xpose.msra.mxu0 0
    %755 = vmatprep.mubr.bf16.mxu0 0
    %756 = vmatmul.mubr.bf16.gmra.mxu0 %v711
    %v757 = vpop.f32.mrf.mxu0
    %v758 = vadd.f32 %v722, %v757
    %v759 = vpop.f32.mrf.mxu0
    %v760 = vpop.f32.mrf.mxu0
    %v761 = vpop.f32.mrf.mxu0
    %762 = vdwg.mxu0
    %vm763 = vcmask 122880
    %764 = vst.msk [vmem:[%s9] sm:$0x1] %vm763, %v758
    // Predicated region
    $region50: #{critic_forward.1} parent=1 // pred_check
      _
    $region51: #{critic_forward.1} parent=1 // pred_check_branch
      %766 = sbr.rel (0) target = $region53
    $region52: #{critic_forward.1} parent=1 // pred_region
      _
    $region53: #{critic_forward.1} parent=1 // pred_fallthru
      _
    // Predicated region
    $region54: #{critic_forward.1} parent=1 // pred_check
      _
    $region55: #{critic_forward.1} parent=1 // pred_check_branch
      %768 = sbr.rel (0) target = $region57
    $region56: #{critic_forward.1} parent=1 // pred_region
      _
    $region57: #{critic_forward.1} parent=1 // pred_fallthru
      _
    %769 = vsyncpa [#allocation4], 1
    %770 = vsyncpa [#allocation6], 1

</llo_original>
